<compile_context>
chip_gen: v7x
topology: tpu7x:2x2x1
jax: 0.10.0
libtpu: 0.0.40
codegen_flags: <defaults>
</compile_context>

<pallas_src>
import functools

import jax
import jax.numpy as jnp
from jax.experimental import pallas as pl
from jax.experimental.pallas import tpu as pltpu


# ----------------------------- small helpers --------------------------------

def _round_up(x, m):
    return (x + m - 1) // m * m


def _round_down_min(x, m):
    return max(m, x // m * m)


def _pad_lane(n):
    """VMEM lane padding: last dim rounds up to 128."""
    return _round_up(n, 128)


def _sub_pack(itemsize):
    """Sublane packing: 8 rows for f32, 16 for bf16, 32 for int8."""
    return 8 * max(1, 4 // max(1, itemsize))


def _pad_sub(n, itemsize):
    return _round_up(n, _sub_pack(itemsize))


def _tpu_vmem_capacity_bytes():
    """Per-TensorCore VMEM capacity; conservative 64 MiB (v7x) fallback."""
    try:
        info = pltpu.get_tpu_info()
        cap = int(getattr(info, "vmem_capacity_bytes", 0))
        if cap > 0:
            return cap
    except Exception:
        pass
    return 64 << 20


def _block_spec(shape, index_map, buffers=None):
    """BlockSpec with an optional explicit buffer count (silent fallback)."""
    if buffers is not None and hasattr(pl, "Buffered"):
        try:
            return pl.BlockSpec(shape, index_map, pipeline_mode=pl.Buffered(buffers))
        except Exception:
            pass
    return pl.BlockSpec(shape, index_map)


# --------------------------------- kernel -----------------------------------

def lora_kernel(x_ref, a_ref, b_ref, o_ref, acc_ref, *, scale, mxu_dtype):
    # x_ref: (tm, tk), a_ref: (tk, r), b_ref: (r, dim_out),
    # o_ref: (tm, dim_out), acc_ref: (tm, r) f32 scratch.
    k = pl.program_id(1)

    @pl.when(k == 0)
    def _init():
        acc_ref[...] = jnp.zeros_like(acc_ref)

    x = x_ref[...]
    a = a_ref[...]
    if mxu_dtype is not None:
        # v5e's MXU is bf16/int only; cast operands, keep f32 accumulation.
        x = x.astype(mxu_dtype)
        a = a.astype(mxu_dtype)
    acc_ref[...] += jnp.dot(x, a, preferred_element_type=jnp.float32)

    @pl.when(k == pl.num_programs(1) - 1)
    def _finalize():
        xa = acc_ref[...]
        if scale != 1.0:
            # Fold scale into the tiny (tm, r) intermediate (compile-time skip
            # when scale == 1.0, which the module semantics guarantee).
            xa = xa * scale
        b = b_ref[...]
        if mxu_dtype is not None:
            xa = xa.astype(mxu_dtype)
            b = b.astype(mxu_dtype)
        out = jnp.dot(xa, b, preferred_element_type=jnp.float32)
        o_ref[...] = out.astype(o_ref.dtype)


# -------------------------------- wrapper ------------------------------------

def lora_forward(x, A, B, scale=1.0, *, tm=None, tk=None, mxu_dtype=None):
    """x: (..., dim), A: (dim, r), B: (r, dim_out) -> (..., dim_out)."""
    *lead, dim = x.shape
    r, dim_out = B.shape
    assert A.shape == (dim, r), f"A shape {A.shape} != {(dim, r)}"

    try:
        scale = float(scale)  # must be static: it selects a compile-time branch
    except Exception as e:
        raise TypeError(
            "scale must be a static Python number (compile-time branch)") from e

    xf = x.reshape(-1, dim)
    M = xf.shape[0]

    x_bytes = jnp.dtype(x.dtype).itemsize
    o_bytes = x_bytes
    ab_bytes = jnp.dtype(A.dtype).itemsize

    vmem_cap = _tpu_vmem_capacity_bytes()
    budget = int(vmem_cap * 0.65)       # generation-aware tile budget

    def raw_tm(tk_):
        """Max row-tile fitting the budget, with lane/sublane padding and the
        f32 intermediates (pre-store matmul result, x@A temp, acc) counted."""
        per_row = (2 * _pad_lane(tk_) * x_bytes         # double-buffered x block
                   + 2 * _pad_lane(dim_out) * o_bytes   # double-buffered out block
                   + _pad_lane(dim_out) * 4             # f32 result before astype
                   + 2 * _pad_lane(r) * 4)              # acc scratch + f32 x@A temp
        fixed = (2 * _pad_sub(tk_, ab_bytes) * _pad_lane(r) * ab_bytes      # A (lane-padded)
                 + 2 * _pad_sub(r, ab_bytes) * _pad_lane(dim_out) * ab_bytes  # B
                 + (2 << 20))                                               # headroom
        return max(8, (budget - fixed) // per_row)

    # --- K (reduction over dim) tiling: only when full-dim x blocks would
    # force the row tile well below the ~512-row HBM-roofline knee (v7x).
    if tk is None:
        tk = dim
        target = min(M, 512)
        if raw_tm(dim) < target and dim % 128 == 0 and dim > 128:
            cands = [c for c in (4096, 2048, 1024, 512, 256, 128)
                     if c < dim and dim % c == 0]
            if cands:
                tk = next((c for c in cands if raw_tm(c) >= target), cands[-1])
    assert tk == dim or dim % tk == 0, "tk must divide dim"
    n_k = 1 if tk == dim else dim // tk

    sub = _sub_pack(x_bytes)
    if tm is None:
        t = raw_tm(tk)
        if t >= M:
            tm = M                                    # full-extent block
            if M >= 1024:                             # keep both v7x TCs busy
                tm = _round_up(-(-M // 2), sub)
        elif t >= 512:
            tm = _round_down_min(min(t, 1024), 256)   # MXU/layout-friendly tile
        else:
            tm = _round_down_min(t, sub)
        # v7x load balance: the "parallel" M axis shards across 2 TCs; keep an
        # even step count (free on single-TC v5e/v6e).
        if tm < M:
            n_m = -(-M // tm)
            if n_m > 1 and n_m % 2 == 1:
                n_m += 1
                tm = max(sub, _round_up(-(-M // n_m), sub))
    tm = int(min(tm, M))
    n_m = -(-M // tm)

    # Explicit VMEM limit from actual (padded) footprints + headroom.
    tm8 = _round_up(tm, 8)
    usage = (2 * _pad_sub(tm, x_bytes) * _pad_lane(tk) * x_bytes
             + 2 * _pad_sub(tm, o_bytes) * _pad_lane(dim_out) * o_bytes
             + 2 * _pad_sub(tk, ab_bytes) * _pad_lane(r) * ab_bytes
             + 2 * _pad_sub(r, ab_bytes) * _pad_lane(dim_out) * ab_bytes
             + tm8 * _pad_lane(r) * 4          # acc scratch
             + tm8 * _pad_lane(dim_out) * 4    # f32 result before astype store
             + tm8 * _pad_lane(r) * 4)         # f32 x@A temp
    vmem_limit = int(min(max(usage + (2 << 20), 16 << 20), vmem_cap * 15 // 16))

    cost = pl.CostEstimate(
        flops=2 * M * r * (dim + dim_out),
        transcendentals=0,
        bytes_accessed=int(M * dim * x_bytes + M * dim_out * o_bytes
                           + n_m * dim * r * ab_bytes + r * dim_out * ab_bytes),
    )

    kernel = functools.partial(lora_kernel, scale=scale, mxu_dtype=mxu_dtype)

    def _call(single_buffer_ab):
        # A is resident (constant block) when there is no K axis; B always is.
        a_buf = 1 if (single_buffer_ab and n_k == 1) else None
        b_buf = 1 if single_buffer_ab else None
        # NOTE: for peak store bandwidth dim_out should be a multiple of 128
        # (lane-dense vst); sub-128 widths fall back to masked partial stores.
        return pl.pallas_call(
            kernel,
            out_shape=jax.ShapeDtypeStruct((M, dim_out), x.dtype),
            grid_spec=pltpu.PrefetchScalarGridSpec(
                num_scalar_prefetch=0,
                grid=(n_m, n_k),                 # ragged last M block is masked
                in_specs=[
                    pl.BlockSpec((tm, tk), lambda i, k: (i, k)),
                    _block_spec((tk, r), lambda i, k: (k, 0), buffers=a_buf),
                    _block_spec((r, dim_out), lambda i, k: (0, 0), buffers=b_buf),
                ],
                out_specs=pl.BlockSpec((tm, dim_out), lambda i, k: (i, 0)),
                scratch_shapes=[pltpu.VMEM((tm, r), jnp.float32)],
            ),
            compiler_params=pltpu.CompilerParams(
                dimension_semantics=("parallel", "arbitrary"),
                vmem_limit_bytes=vmem_limit,
            ),
            cost_estimate=cost,
        )(xf, A, B)

    try:
        out = _call(True)
    except Exception:
        # Fallback for JAX versions without pipeline_mode single-buffering.
        out = _call(False)

    return out.reshape(*lead, dim_out)


# --------------------------------- demo --------------------------------------

if __name__ == "__main__":
    # Small shapes consistent with the module: batch=2, seq=8, dim=32, dim_out=32, r=8
    batch, seq, dim, dim_out, r = 2, 8, 32, 32, 8
    alpha = r            # module: default(alpha, r) -> r whenever alpha is given
    scale = alpha / r    # == 1.0 (matches the PyTorch module's effective behavior)

    key = jax.random.PRNGKey(0)
    kx, ka, kb = jax.random.split(key, 3)
    x = jax.random.normal(kx, (batch, seq, dim), dtype=jnp.float32)
    # Module init: A ~ randn(dim, r), B = zeros(r, dim_out).  B=0 makes the
    # output trivially zero, so for a meaningful numeric check use a random B
    # too (forward semantics unchanged).
    A = jax.random.normal(ka, (dim, r), dtype=jnp.float32)
    B = 0.1 * jax.random.normal(kb, (r, dim_out), dtype=jnp.float32)

    out = jax.block_until_ready(lora_forward(x, A, B, scale))
    ref = x @ (A @ B * scale)
    assert out.shape == (batch, seq, dim_out)
    assert jnp.allclose(out, ref, atol=1e-5, rtol=1e-5), "mismatch vs reference"

    # Ragged row count (M = 22, not a tile multiple).
    x_rag = jax.random.normal(kx, (2, 11, dim), dtype=jnp.float32)
    out_rag = jax.block_until_ready(lora_forward(x_rag, A, B, scale))
    assert jnp.allclose(out_rag, x_rag @ (A @ B * scale), atol=1e-5, rtol=1e-5)

    # Non-unit scale path (exercises the compile-time scale fold).
    out_s = jax.block_until_ready(lora_forward(x, A, B, 0.5))
    assert jnp.allclose(out_s, x @ (A @ B * 0.5), atol=1e-5, rtol=1e-5)

    # Module's literal init (B = zeros) produces zeros.
    out_zero = jax.block_until_ready(
        lora_forward(x, A, jnp.zeros((r, dim_out), jnp.float32), scale))
    assert jnp.allclose(out_zero, 0.0)

    # K-reduction path: dim split over a reduction grid axis with acc scratch.
    dim2, dim_out2, m2 = 256, 128, 40
    x2 = jax.random.normal(kx, (m2, dim2), dtype=jnp.float32)
    A2 = 0.1 * jax.random.normal(ka, (dim2, r), dtype=jnp.float32)
    B2 = 0.1 * jax.random.normal(kb, (r, dim_out2), dtype=jnp.float32)
    out2 = jax.block_until_ready(lora_forward(x2, A2, B2, scale, tk=128))
    assert jnp.allclose(out2, x2 @ (A2 @ B2 * scale), atol=1e-4, rtol=1e-4)

    # bf16 inputs (halves HBM bytes; natural bf16 MXU operands, e.g. v5e).
    xb, Ab, Bb = (t.astype(jnp.bfloat16) for t in (x, A, B))
    outb = jax.block_until_ready(lora_forward(xb, Ab, Bb, scale))
    refb = xb.astype(jnp.float32) @ (Ab.astype(jnp.float32) @ Bb.astype(jnp.float32))
    assert jnp.allclose(outb.astype(jnp.float32), refb, atol=0.1, rtol=0.1)

    print("KERNEL_OK")
</pallas_src>

<mosaic_0001>
module attributes {stable_mosaic.version = 11 : i64} {
  func.func @lora_kernel(%arg0: i32, %arg1: i32, %arg2: memref<16x32xf32, #tpu.memory_space<vmem>>, %arg3: memref<32x8xf32, #tpu.memory_space<vmem>>, %arg4: memref<8x32xf32, #tpu.memory_space<vmem>>, %arg5: memref<16x32xf32, #tpu.memory_space<vmem>>, %arg6: memref<16x8xf32, #tpu.memory_space<vmem>>) attributes {dimension_semantics = [#tpu.dimension_semantics<parallel>, #tpu.dimension_semantics<arbitrary>], iteration_bounds = array<i64: 1, 1>, scalar_prefetch = 0 : i64, scratch_operands = 1 : i64, tpu.core_type = #tpu.core_type<tc>, window_params = [{transform_indices = @transform_0, window_bounds = array<i64: 16, 32>}, {pipeline_mode = #tpu.pipeline_mode<synchronous>, transform_indices = @transform_1, window_bounds = array<i64: 32, 8>}, {pipeline_mode = #tpu.pipeline_mode<synchronous>, transform_indices = @transform_2, window_bounds = array<i64: 8, 32>}, {transform_indices = @transform_3, window_bounds = array<i64: 16, 32>}]} {
    %c0_i32 = arith.constant 0 : i32
    %0 = arith.cmpi eq, %arg1, %c0_i32 : i32
    %1 = arith.extui %0 : i1 to i32
    %c0_i32_0 = arith.constant 0 : i32
    %2 = arith.cmpi ne, %1, %c0_i32_0 : i32
    scf.if %2 {
      %cst_10 = arith.constant 0.000000e+00 : f32
      %12 = vector.broadcast %cst_10 : f32 to vector<16x8xf32>
      %c0_11 = arith.constant 0 : index
      %c0_12 = arith.constant 0 : index
      %13 = vector.load %arg6[%c0_11, %c0_12] : memref<16x8xf32, #tpu.memory_space<vmem>>, vector<16x8xf32>
      tpu.vector_store %arg6[%c0_11, %c0_12], %12 {strides = array<i32>} : memref<16x8xf32, #tpu.memory_space<vmem>>, vector<16x8xf32>,
    } else {
    }
    %c0 = arith.constant 0 : index
    %c0_1 = arith.constant 0 : index
    %3 = vector.load %arg2[%c0, %c0_1] : memref<16x32xf32, #tpu.memory_space<vmem>>, vector<16x32xf32>
    %c0_2 = arith.constant 0 : index
    %c0_3 = arith.constant 0 : index
    %4 = vector.load %arg3[%c0_2, %c0_3] : memref<32x8xf32, #tpu.memory_space<vmem>>, vector<32x8xf32>
    %c0_4 = arith.constant 0 : index
    %c0_5 = arith.constant 0 : index
    %5 = vector.load %arg6[%c0_4, %c0_5] : memref<16x8xf32, #tpu.memory_space<vmem>>, vector<16x8xf32>
    %cst = arith.constant dense<0.000000e+00> : vector<16x8xf32>
    %6 = tpu.matmul %3, %4, %cst {dimension_numbers = #tpu.dot_dimension_numbers<[1], [0], [0], [1], [0, 0, 1, 1], [], []>} : vector<16x32xf32>, vector<32x8xf32>, vector<16x8xf32> -> vector<16x8xf32>
    %7 = arith.addf %5, %6 : vector<16x8xf32>
    %c0_6 = arith.constant 0 : index
    %c0_7 = arith.constant 0 : index
    %8 = vector.load %arg6[%c0_6, %c0_7] : memref<16x8xf32, #tpu.memory_space<vmem>>, vector<16x8xf32>
    tpu.vector_store %arg6[%c0_6, %c0_7], %7 {strides = array<i32>} : memref<16x8xf32, #tpu.memory_space<vmem>>, vector<16x8xf32>,
    %c0_i32_8 = arith.constant 0 : i32
    %9 = arith.cmpi eq, %arg1, %c0_i32_8 : i32
    %10 = arith.extui %9 : i1 to i32
    %c0_i32_9 = arith.constant 0 : i32
    %11 = arith.cmpi ne, %10, %c0_i32_9 : i32
    scf.if %11 {
      %c0_10 = arith.constant 0 : index
      %c0_11 = arith.constant 0 : index
      %12 = vector.load %arg6[%c0_10, %c0_11] : memref<16x8xf32, #tpu.memory_space<vmem>>, vector<16x8xf32>
      %c0_12 = arith.constant 0 : index
      %c0_13 = arith.constant 0 : index
      %13 = vector.load %arg4[%c0_12, %c0_13] : memref<8x32xf32, #tpu.memory_space<vmem>>, vector<8x32xf32>
      %cst_14 = arith.constant dense<0.000000e+00> : vector<16x32xf32>
      %14 = tpu.matmul %12, %13, %cst_14 {dimension_numbers = #tpu.dot_dimension_numbers<[1], [0], [0], [1], [0, 0, 1, 1], [], []>} : vector<16x8xf32>, vector<8x32xf32>, vector<16x32xf32> -> vector<16x32xf32>
      %c0_15 = arith.constant 0 : index
      %c0_16 = arith.constant 0 : index
      %15 = vector.load %arg5[%c0_15, %c0_16] : memref<16x32xf32, #tpu.memory_space<vmem>>, vector<16x32xf32>
      tpu.vector_store %arg5[%c0_15, %c0_16], %14 {strides = array<i32>} : memref<16x32xf32, #tpu.memory_space<vmem>>, vector<16x32xf32>,
    } else {
    }
    return
  }
  func.func @transform_0(%arg0: i32, %arg1: i32) -> (i32, i32) {
    %c0_i32 = arith.constant 0 : i32
    return %arg0, %arg1 : i32, i32
  }
  func.func @transform_1(%arg0: i32, %arg1: i32) -> (i32, i32) {
    %c0_i32 = arith.constant 0 : i32
    %c0_i32_0 = arith.constant 0 : i32
    return %arg1, %c0_i32 : i32, i32
  }
  func.func @transform_2(%arg0: i32, %arg1: i32) -> (i32, i32) {
    %c0_i32 = arith.constant 0 : i32
    %c0_i32_0 = arith.constant 0 : i32
    %c0_i32_1 = arith.constant 0 : i32
    return %c0_i32, %c0_i32_0 : i32, i32
  }
  func.func @transform_3(%arg0: i32, %arg1: i32) -> (i32, i32) {
    %c0_i32 = arith.constant 0 : i32
    %c0_i32_0 = arith.constant 0 : i32
    return %arg0, %c0_i32 : i32, i32
  }
}

module attributes {stable_mosaic.version = 11 : i64} {
  func.func @lora_kernel(%arg0: i32, %arg1: i32, %arg2: memref<16x32xf32, #tpu.memory_space<vmem>>, %arg3: memref<32x8xf32, #tpu.memory_space<vmem>>, %arg4: memref<8x32xf32, #tpu.memory_space<vmem>>, %arg5: memref<16x32xf32, #tpu.memory_space<vmem>>, %arg6: memref<16x8xf32, #tpu.memory_space<vmem>>) attributes {dimension_semantics = [#tpu.dimension_semantics<parallel>, #tpu.dimension_semantics<arbitrary>], iteration_bounds = array<i64: 1, 1>, scalar_prefetch = 0 : i64, scratch_operands = 1 : i64, tpu.core_type = #tpu.core_type<tc>, window_params = [{transform_indices = @transform_0, window_bounds = array<i64: 16, 32>}, {transform_indices = @transform_1, window_bounds = array<i64: 32, 8>}, {pipeline_mode = #tpu.pipeline_mode<synchronous>, transform_indices = @transform_2, window_bounds = array<i64: 8, 32>}, {transform_indices = @transform_3, window_bounds = array<i64: 16, 32>}]} {
    %c0_i32 = arith.constant 0 : i32
    %0 = arith.cmpi eq, %arg1, %c0_i32 : i32
    %1 = arith.extui %0 : i1 to i32
    %c0_i32_0 = arith.constant 0 : i32
    %2 = arith.cmpi ne, %1, %c0_i32_0 : i32
    scf.if %2 {
      %cst_10 = arith.constant 0.000000e+00 : f32
      %12 = vector.broadcast %cst_10 : f32 to vector<16x8xf32>
      %c0_11 = arith.constant 0 : index
      %c0_12 = arith.constant 0 : index
      %13 = vector.load %arg6[%c0_11, %c0_12] : memref<16x8xf32, #tpu.memory_space<vmem>>, vector<16x8xf32>
      tpu.vector_store %arg6[%c0_11, %c0_12], %12 {strides = array<i32>} : memref<16x8xf32, #tpu.memory_space<vmem>>, vector<16x8xf32>,
    } else {
    }
    %c0 = arith.constant 0 : index
    %c0_1 = arith.constant 0 : index
    %3 = vector.load %arg2[%c0, %c0_1] : memref<16x32xf32, #tpu.memory_space<vmem>>, vector<16x32xf32>
    %c0_2 = arith.constant 0 : index
    %c0_3 = arith.constant 0 : index
    %4 = vector.load %arg3[%c0_2, %c0_3] : memref<32x8xf32, #tpu.memory_space<vmem>>, vector<32x8xf32>
    %c0_4 = arith.constant 0 : index
    %c0_5 = arith.constant 0 : index
    %5 = vector.load %arg6[%c0_4, %c0_5] : memref<16x8xf32, #tpu.memory_space<vmem>>, vector<16x8xf32>
    %cst = arith.constant dense<0.000000e+00> : vector<16x8xf32>
    %6 = tpu.matmul %3, %4, %cst {dimension_numbers = #tpu.dot_dimension_numbers<[1], [0], [0], [1], [0, 0, 1, 1], [], []>} : vector<16x32xf32>, vector<32x8xf32>, vector<16x8xf32> -> vector<16x8xf32>
    %7 = arith.addf %5, %6 : vector<16x8xf32>
    %c0_6 = arith.constant 0 : index
    %c0_7 = arith.constant 0 : index
    %8 = vector.load %arg6[%c0_6, %c0_7] : memref<16x8xf32, #tpu.memory_space<vmem>>, vector<16x8xf32>
    tpu.vector_store %arg6[%c0_6, %c0_7], %7 {strides = array<i32>} : memref<16x8xf32, #tpu.memory_space<vmem>>, vector<16x8xf32>,
    %c0_i32_8 = arith.constant 0 : i32
    %9 = arith.cmpi eq, %arg1, %c0_i32_8 : i32
    %10 = arith.extui %9 : i1 to i32
    %c0_i32_9 = arith.constant 0 : i32
    %11 = arith.cmpi ne, %10, %c0_i32_9 : i32
    scf.if %11 {
      %c0_10 = arith.constant 0 : index
      %c0_11 = arith.constant 0 : index
      %12 = vector.load %arg6[%c0_10, %c0_11] : memref<16x8xf32, #tpu.memory_space<vmem>>, vector<16x8xf32>
      %c0_12 = arith.constant 0 : index
      %c0_13 = arith.constant 0 : index
      %13 = vector.load %arg4[%c0_12, %c0_13] : memref<8x32xf32, #tpu.memory_space<vmem>>, vector<8x32xf32>
      %cst_14 = arith.constant dense<0.000000e+00> : vector<16x32xf32>
      %14 = tpu.matmul %12, %13, %cst_14 {dimension_numbers = #tpu.dot_dimension_numbers<[1], [0], [0], [1], [0, 0, 1, 1], [], []>} : vector<16x8xf32>, vector<8x32xf32>, vector<16x32xf32> -> vector<16x32xf32>
      %c0_15 = arith.constant 0 : index
      %c0_16 = arith.constant 0 : index
      %15 = vector.load %arg5[%c0_15, %c0_16] : memref<16x32xf32, #tpu.memory_space<vmem>>, vector<16x32xf32>
      tpu.vector_store %arg5[%c0_15, %c0_16], %14 {strides = array<i32>} : memref<16x32xf32, #tpu.memory_space<vmem>>, vector<16x32xf32>,
    } else {
    }
    return
  }
  func.func @transform_0(%arg0: i32, %arg1: i32) -> (i32, i32) {
    %c0_i32 = arith.constant 0 : i32
    return %arg0, %arg1 : i32, i32
  }
  func.func @transform_1(%arg0: i32, %arg1: i32) -> (i32, i32) {
    %c0_i32 = arith.constant 0 : i32
    %c0_i32_0 = arith.constant 0 : i32
    return %arg1, %c0_i32 : i32, i32
  }
  func.func @transform_2(%arg0: i32, %arg1: i32) -> (i32, i32) {
    %c0_i32 = arith.constant 0 : i32
    %c0_i32_0 = arith.constant 0 : i32
    %c0_i32_1 = arith.constant 0 : i32
    return %c0_i32, %c0_i32_0 : i32, i32
  }
  func.func @transform_3(%arg0: i32, %arg1: i32) -> (i32, i32) {
    %c0_i32 = arith.constant 0 : i32
    %c0_i32_0 = arith.constant 0 : i32
    return %arg0, %c0_i32 : i32, i32
  }
}

</mosaic_0001>

<llo_original>
// kernel: tpu_custom_call.1
$region0: #{tpu_custom_call.1}
  #allocation0 [shape = 'u32[]', space=smem, size = 0x4, offset = 0x4, fixed_abs, tag = 'smem constant byte address 0x4 - core index']
  #allocation1 [shape = 'u32[144,128]{1,0:T(1,128)}', space=vmem, size = 0x12000, scoped, tag = 'internal scratch']
  #allocation2 [shape = 'f32[16,8]{1,0:T(8,128)}', space=vmem, size = 0x2000, scoped, tag = 'scratch operand']
  %s0 = inlined_call_operand.vmem [shape: f32[16,32], index: 0, kind: input, shape index: {}]
  %s1 = inlined_call_operand.vmem [shape: f32[32,8], index: 1, kind: input, shape index: {}]
  %s2 = inlined_call_operand.vmem [shape: f32[8,32], index: 2, kind: input, shape index: {}]
  %s3 = inlined_call_operand.hbm [shape: f32[16,32], index: 3, kind: output, shape index: {}]
  %s4 = sld [smem:[#allocation0]]
  $region30: #{tpu_custom_call.1} parent=0
    _
  %s6 = ssub.s32 1, %s4
  %s7 = scalar_select 0, %s6, %s4
  $region1: #{tpu_custom_call.1} parent=0
    #allocation3 [shape = 'u8[8192]{0}', space=vmem, size = 0x2000, scoped, tag = 'output window, operand 0, single buffered']
    #allocation4 [shape = 's32[1]{0}', space=sflag, size = 0x4, scoped, tag = 'scoped memory for tpu_custom_call.1']
    %8 = vsyncpa [#allocation4], 0
    // Predicated region
    $region2: #{tpu_custom_call.1} parent=1 // pred_check
      _
    $region3: #{tpu_custom_call.1} parent=1 // pred_check_branch
      %10 = sbr.rel (0) target = $region5
    $region4: #{tpu_custom_call.1} parent=1 // pred_region
      _
    $region5: #{tpu_custom_call.1} parent=1 // pred_fallthru
      _
    // Predicated region
    $region6: #{tpu_custom_call.1} parent=1 // pred_check
      _
    $region7: #{tpu_custom_call.1} parent=1 // pred_check_branch
      %12 = sbr.rel (0) target = $region9
    $region8: #{tpu_custom_call.1} parent=1 // pred_region
      _
    $region9: #{tpu_custom_call.1} parent=1 // pred_fallthru
      _
    // Predicated region
    $region10: #{tpu_custom_call.1} parent=1 // pred_check
      _
    $region11: #{tpu_custom_call.1} parent=1 // pred_check_branch
      %14 = sbr.rel (0) target = $region13
    $region12: #{tpu_custom_call.1} parent=1 // pred_region
      _
    $region13: #{tpu_custom_call.1} parent=1 // pred_fallthru
      _
    %p15 = scmp.eq.s32.totalorder 0, 0
    // Predicated region
    $region14: #{tpu_custom_call.1} parent=1 // pred_check
      %p16 = pneg %p15
    $region15: #{tpu_custom_call.1} parent=1 // pred_check_branch
      %18 = sbr.rel (%p16) target = $region17
    $region16: #{tpu_custom_call.1} parent=1 // pred_region
      %vm19 = vcmask 64512
      %20 = vst.msk [vmem:[#allocation2] sm:$0xff] %vm19, 0.0
      %21 = vst.msk [vmem:[#allocation2 + $0x8] sm:$0xff] %vm19, 0.0
    $region17: #{tpu_custom_call.1} parent=1 // pred_fallthru
      _
    %v22 = vld [vmem:[%s0] sm:$0xff]
    %v23 = vld [vmem:[%s0 + $0x8] sm:$0xff]
    %v24 = vld [vmem:[%s1] sm:$0xff]
    %v25 = vld [vmem:[%s1 + $0x8] sm:$0xff]
    %v26 = vld [vmem:[%s1 + $0x10] sm:$0xff]
    %v27 = vld [vmem:[%s1 + $0x18] sm:$0xff]
    %v28 = vld [vmem:[#allocation2] sm:$0xff]
    %v29 = vld [vmem:[#allocation2 + $0x8] sm:$0xff]
    %vm30 = vcmask 261120
    %v32 = vsel %vm30, %v22, 0
    %v35 = vsel %vm30, %v23, 0
    %37 = vmatprep.subr.mxu0 0.0
    %38 = vmatpush1.msra.mxu0 %v24
    %39 = vmatprep.subr.mxu0 0.0
    %40 = vmatpush1.msra.mxu0 %v25
    %41 = vmatprep.subr.mxu0 0.0
    %42 = vmatpush1.msra.mxu0 %v26
    %43 = vmatprep.subr.mxu0 0.0
    %44 = vmatpush1.msra.mxu0 %v27
    %45 = vmatprep.subr.mxu0 0.0
    %46 = vmatpush1.msra.mxu0 0.0
    %47 = vmatprep.subr.mxu0 0.0
    %48 = vmatpush1.msra.mxu0 0.0
    %49 = vmatprep.subr.mxu0 0.0
    %50 = vmatpush1.msra.mxu0 0.0
    %51 = vmatprep.subr.mxu0 0.0
    %52 = vmatpush1.msra.mxu0 0.0
    %53 = vmatprep.subr.mxu0 0.0
    %54 = vmatpush1.msra.mxu0 0.0
    %55 = vmatprep.subr.mxu0 0.0
    %56 = vmatpush1.msra.mxu0 0.0
    %57 = vmatprep.subr.mxu0 0.0
    %58 = vmatpush1.msra.mxu0 0.0
    %59 = vmatprep.subr.mxu0 0.0
    %60 = vmatpush1.msra.mxu0 0.0
    %61 = vmatprep.subr.mxu0 0.0
    %62 = vmatpush1.msra.mxu0 0.0
    %63 = vmatprep.subr.mxu0 0.0
    %64 = vmatpush1.msra.mxu0 0.0
    %65 = vmatprep.subr.mxu0 0.0
    %66 = vmatpush1.msra.mxu0 0.0
    %67 = vmatprep.subr.mxu0 0.0
    %68 = vmatpush1.msra.mxu0 0.0
    %69 = vmatprep.subr.mxu0 0.0
    %70 = vmatpush1.msra.mxu0 0.0
    %71 = vmatprep.subr.mxu0 0.0
    %72 = vmatpush1.msra.mxu0 0.0
    %73 = vmatprep.subr.mxu0 0.0
    %74 = vmatpush1.msra.mxu0 0.0
    %75 = vmatprep.subr.mxu0 0.0
    %76 = vmatpush1.msra.mxu0 0.0
    %77 = vmatprep.subr.mxu0 0.0
    %78 = vmatpush1.msra.mxu0 0.0
    %79 = vmatprep.subr.mxu0 0.0
    %80 = vmatpush1.msra.mxu0 0.0
    %81 = vmatprep.subr.mxu0 0.0
    %82 = vmatpush1.msra.mxu0 0.0
    %83 = vmatprep.subr.mxu0 0.0
    %84 = vmatpush1.msra.mxu0 0.0
    %85 = vmatprep.subr.mxu0 0.0
    %86 = vmatpush1.msra.mxu0 0.0
    %87 = vmatprep.subr.mxu0 0.0
    %88 = vmatpush1.msra.mxu0 0.0
    %89 = vmatprep.subr.mxu0 0.0
    %90 = vmatpush1.msra.mxu0 0.0
    %91 = vmatprep.subr.mxu0 0.0
    %92 = vmatpush1.msra.mxu0 0.0
    %93 = vmatprep.subr.mxu0 0.0
    %94 = vmatpush1.msra.mxu0 0.0
    %95 = vmatprep.subr.mxu0 0.0
    %96 = vmatpush1.msra.mxu0 0.0
    %97 = vmatprep.subr.mxu0 0.0
    %98 = vmatpush1.msra.mxu0 0.0
    %99 = vmatprep.subr.mxu0 0.0
    %100 = vmatpush1.msra.mxu0 0.0
    %101 = vmatprep.mubr.f32.mxu0 0.0
    %102 = vmatmul.mubr.f32.gmra.mrb[0].mxu0 %v32
    %v103 = vpop.f32.mrb[0].mxu0
    %v104 = vadd.f32 0.0, %v103
    %v105 = vpop.f32.mrb[0].mxu0
    %106 = vmatprep.mubr.f32.mxu0 0.0
    %107 = vmatmul.mubr.f32.gmra.mrb[0].mxu0 %v35
    %v108 = vpop.f32.mrb[0].mxu0
    %v109 = vadd.f32 0.0, %v108
    %v110 = vpop.f32.mrb[0].mxu0
    %111 = vdwg.mxu0
    %v112 = vadd.f32 %v28, %v104
    %v113 = vadd.f32 %v29, %v109
    %vm114 = vcmask 64512
    %115 = vst.msk [vmem:[#allocation2] sm:$0xff] %vm114, %v112
    %116 = vst.msk [vmem:[#allocation2 + $0x8] sm:$0xff] %vm114, %v113
    // Predicated region
    $region18: #{tpu_custom_call.1} parent=1 // pred_check
      %p117 = pneg %p15
    $region19: #{tpu_custom_call.1} parent=1 // pred_check_branch
      %119 = sbr.rel (%p117) target = $region21
    $region20: #{tpu_custom_call.1} parent=1 // pred_region
      %v120 = vld [vmem:[#allocation2] sm:$0xff]
      %v121 = vld [vmem:[#allocation2 + $0x8] sm:$0xff]
      %v122 = vld [vmem:[%s2] sm:$0xff]
      %v124 = vsel %vm114, %v120, 0
      %v127 = vsel %vm114, %v121, 0
      %129 = vmatprep.subr.mxu0 0.0
      %130 = vmatpush1.msra.mxu0 %v122
      %131 = vmatprep.subr.mxu0 0.0
      %132 = vmatpush1.msra.mxu0 0.0
      %133 = vmatprep.subr.mxu0 0.0
      %134 = vmatpush1.msra.mxu0 0.0
      %135 = vmatprep.subr.mxu0 0.0
      %136 = vmatpush1.msra.mxu0 0.0
      %137 = vmatprep.subr.mxu0 0.0
      %138 = vmatpush1.msra.mxu0 0.0
      %139 = vmatprep.subr.mxu0 0.0
      %140 = vmatpush1.msra.mxu0 0.0
      %141 = vmatprep.subr.mxu0 0.0
      %142 = vmatpush1.msra.mxu0 0.0
      %143 = vmatprep.subr.mxu0 0.0
      %144 = vmatpush1.msra.mxu0 0.0
      %145 = vmatprep.subr.mxu0 0.0
      %146 = vmatpush1.msra.mxu0 0.0
      %147 = vmatprep.subr.mxu0 0.0
      %148 = vmatpush1.msra.mxu0 0.0
      %149 = vmatprep.subr.mxu0 0.0
      %150 = vmatpush1.msra.mxu0 0.0
      %151 = vmatprep.subr.mxu0 0.0
      %152 = vmatpush1.msra.mxu0 0.0
      %153 = vmatprep.subr.mxu0 0.0
      %154 = vmatpush1.msra.mxu0 0.0
      %155 = vmatprep.subr.mxu0 0.0
      %156 = vmatpush1.msra.mxu0 0.0
      %157 = vmatprep.subr.mxu0 0.0
      %158 = vmatpush1.msra.mxu0 0.0
      %159 = vmatprep.subr.mxu0 0.0
      %160 = vmatpush1.msra.mxu0 0.0
      %161 = vmatprep.subr.mxu0 0.0
      %162 = vmatpush1.msra.mxu0 0.0
      %163 = vmatprep.subr.mxu0 0.0
      %164 = vmatpush1.msra.mxu0 0.0
      %165 = vmatprep.subr.mxu0 0.0
      %166 = vmatpush1.msra.mxu0 0.0
      %167 = vmatprep.subr.mxu0 0.0
      %168 = vmatpush1.msra.mxu0 0.0
      %169 = vmatprep.subr.mxu0 0.0
      %170 = vmatpush1.msra.mxu0 0.0
      %171 = vmatprep.subr.mxu0 0.0
      %172 = vmatpush1.msra.mxu0 0.0
      %173 = vmatprep.subr.mxu0 0.0
      %174 = vmatpush1.msra.mxu0 0.0
      %175 = vmatprep.subr.mxu0 0.0
      %176 = vmatpush1.msra.mxu0 0.0
      %177 = vmatprep.subr.mxu0 0.0
      %178 = vmatpush1.msra.mxu0 0.0
      %179 = vmatprep.subr.mxu0 0.0
      %180 = vmatpush1.msra.mxu0 0.0
      %181 = vmatprep.subr.mxu0 0.0
      %182 = vmatpush1.msra.mxu0 0.0
      %183 = vmatprep.subr.mxu0 0.0
      %184 = vmatpush1.msra.mxu0 0.0
      %185 = vmatprep.subr.mxu0 0.0
      %186 = vmatpush1.msra.mxu0 0.0
      %187 = vmatprep.subr.mxu0 0.0
      %188 = vmatpush1.msra.mxu0 0.0
      %189 = vmatprep.subr.mxu0 0.0
      %190 = vmatpush1.msra.mxu0 0.0
      %191 = vmatprep.subr.mxu0 0.0
      %192 = vmatpush1.msra.mxu0 0.0
      %193 = vmatprep.mubr.f32.mxu0 0.0
      %194 = vmatmul.mubr.f32.gmra.mrb[0].mxu0 %v124
      %v195 = vpop.f32.mrb[0].mxu0
      %v196 = vadd.f32 0.0, %v195
      %v197 = vpop.f32.mrb[0].mxu0
      %198 = vmatprep.mubr.f32.mxu0 0.0
      %199 = vmatmul.mubr.f32.gmra.mrb[0].mxu0 %v127
      %v200 = vpop.f32.mrb[0].mxu0
      %v201 = vadd.f32 0.0, %v200
      %v202 = vpop.f32.mrb[0].mxu0
      %203 = vdwg.mxu0
      %204 = vst.msk [vmem:[#allocation3] sm:$0xff] %vm30, %v196
      %205 = vst.msk [vmem:[#allocation3 + $0x8] sm:$0xff] %vm30, %v201
    $region21: #{tpu_custom_call.1} parent=1 // pred_fallthru
      _
    // Predicated region
    $region22: #{tpu_custom_call.1} parent=1 // pred_check
      _
    $region23: #{tpu_custom_call.1} parent=1 // pred_check_branch
      %207 = sbr.rel (0) target = $region25
    $region24: #{tpu_custom_call.1} parent=1 // pred_region
      %s209 = ssub.s32 256, 256
      %210 = vsyncadd [#allocation4], %s209
      %s211 = sshll.u32 [#allocation3], 4
      %s212 = int_to_ptr.vmem [resolvable:$true] %s211
      %217 = dma.vmem_to_hbm [thread:$0]  %s212, 256, %s3, [#allocation4], 128, 128, 8
    $region25: #{tpu_custom_call.1} parent=1 // pred_fallthru
      _
    // Predicated region
    $region26: #{tpu_custom_call.1} parent=1 // pred_check
      _
    $region27: #{tpu_custom_call.1} parent=1 // pred_check_branch
      %219 = sbr.rel (0) target = $region29
    $region28: #{tpu_custom_call.1} parent=1 // pred_region
      %220 = dma.done [#allocation4], 256
    $region29: #{tpu_custom_call.1} parent=1 // pred_fallthru
      _
    %221 = vsyncpa [#allocation4], 1

// kernel: tpu_custom_call.1
$region0: #{tpu_custom_call.1}
  #allocation0 [shape = 'u32[]', space=smem, size = 0x4, offset = 0x4, fixed_abs, tag = 'smem constant byte address 0x4 - core index']
  #allocation1 [shape = 'u32[144,128]{1,0:T(1,128)}', space=vmem, size = 0x12000, scoped, tag = 'internal scratch']
  #allocation2 [shape = 'f32[16,8]{1,0:T(8,128)}', space=vmem, size = 0x2000, scoped, tag = 'scratch operand']
  %s0 = inlined_call_operand.vmem [shape: f32[16,32], index: 0, kind: input, shape index: {}]
  %s1 = inlined_call_operand.vmem [shape: f32[32,8], index: 1, kind: input, shape index: {}]
  %s2 = inlined_call_operand.vmem [shape: f32[8,32], index: 2, kind: input, shape index: {}]
  %s3 = inlined_call_operand.hbm [shape: f32[16,32], index: 3, kind: output, shape index: {}]
  %s4 = sld [smem:[#allocation0]]
  $region30: #{tpu_custom_call.1} parent=0
    _
  %s6 = ssub.s32 1, %s4
  %s7 = scalar_select 0, %s6, %s4
  $region1: #{tpu_custom_call.1} parent=0
    #allocation3 [shape = 'u8[8192]{0}', space=vmem, size = 0x2000, scoped, tag = 'output window, operand 0, single buffered']
    #allocation4 [shape = 's32[1]{0}', space=sflag, size = 0x4, scoped, tag = 'scoped memory for tpu_custom_call.1']
    %8 = vsyncpa [#allocation4], 0
    // Predicated region
    $region2: #{tpu_custom_call.1} parent=1 // pred_check
      _
    $region3: #{tpu_custom_call.1} parent=1 // pred_check_branch
      %10 = sbr.rel (0) target = $region5
    $region4: #{tpu_custom_call.1} parent=1 // pred_region
      _
    $region5: #{tpu_custom_call.1} parent=1 // pred_fallthru
      _
    // Predicated region
    $region6: #{tpu_custom_call.1} parent=1 // pred_check
      _
    $region7: #{tpu_custom_call.1} parent=1 // pred_check_branch
      %12 = sbr.rel (0) target = $region9
    $region8: #{tpu_custom_call.1} parent=1 // pred_region
      _
    $region9: #{tpu_custom_call.1} parent=1 // pred_fallthru
      _
    // Predicated region
    $region10: #{tpu_custom_call.1} parent=1 // pred_check
      _
    $region11: #{tpu_custom_call.1} parent=1 // pred_check_branch
      %14 = sbr.rel (0) target = $region13
    $region12: #{tpu_custom_call.1} parent=1 // pred_region
      _
    $region13: #{tpu_custom_call.1} parent=1 // pred_fallthru
      _
    %p15 = scmp.eq.s32.totalorder 0, 0
    // Predicated region
    $region14: #{tpu_custom_call.1} parent=1 // pred_check
      %p16 = pneg %p15
    $region15: #{tpu_custom_call.1} parent=1 // pred_check_branch
      %18 = sbr.rel (%p16) target = $region17
    $region16: #{tpu_custom_call.1} parent=1 // pred_region
      %vm19 = vcmask 64512
      %20 = vst.msk [vmem:[#allocation2] sm:$0xff] %vm19, 0.0
      %21 = vst.msk [vmem:[#allocation2 + $0x8] sm:$0xff] %vm19, 0.0
    $region17: #{tpu_custom_call.1} parent=1 // pred_fallthru
      _
    %v22 = vld [vmem:[%s0] sm:$0xff]
    %v23 = vld [vmem:[%s0 + $0x8] sm:$0xff]
    %v24 = vld [vmem:[%s1] sm:$0xff]
    %v25 = vld [vmem:[%s1 + $0x8] sm:$0xff]
    %v26 = vld [vmem:[%s1 + $0x10] sm:$0xff]
    %v27 = vld [vmem:[%s1 + $0x18] sm:$0xff]
    %v28 = vld [vmem:[#allocation2] sm:$0xff]
    %v29 = vld [vmem:[#allocation2 + $0x8] sm:$0xff]
    %vm30 = vcmask 261120
    %v32 = vsel %vm30, %v22, 0
    %v35 = vsel %vm30, %v23, 0
    %37 = vmatprep.subr.mxu0 0.0
    %38 = vmatpush1.msra.mxu0 %v24
    %39 = vmatprep.subr.mxu0 0.0
    %40 = vmatpush1.msra.mxu0 %v25
    %41 = vmatprep.subr.mxu0 0.0
    %42 = vmatpush1.msra.mxu0 %v26
    %43 = vmatprep.subr.mxu0 0.0
    %44 = vmatpush1.msra.mxu0 %v27
    %45 = vmatprep.subr.mxu0 0.0
    %46 = vmatpush1.msra.mxu0 0.0
    %47 = vmatprep.subr.mxu0 0.0
    %48 = vmatpush1.msra.mxu0 0.0
    %49 = vmatprep.subr.mxu0 0.0
    %50 = vmatpush1.msra.mxu0 0.0
    %51 = vmatprep.subr.mxu0 0.0
    %52 = vmatpush1.msra.mxu0 0.0
    %53 = vmatprep.subr.mxu0 0.0
    %54 = vmatpush1.msra.mxu0 0.0
    %55 = vmatprep.subr.mxu0 0.0
    %56 = vmatpush1.msra.mxu0 0.0
    %57 = vmatprep.subr.mxu0 0.0
    %58 = vmatpush1.msra.mxu0 0.0
    %59 = vmatprep.subr.mxu0 0.0
    %60 = vmatpush1.msra.mxu0 0.0
    %61 = vmatprep.subr.mxu0 0.0
    %62 = vmatpush1.msra.mxu0 0.0
    %63 = vmatprep.subr.mxu0 0.0
    %64 = vmatpush1.msra.mxu0 0.0
    %65 = vmatprep.subr.mxu0 0.0
    %66 = vmatpush1.msra.mxu0 0.0
    %67 = vmatprep.subr.mxu0 0.0
    %68 = vmatpush1.msra.mxu0 0.0
    %69 = vmatprep.subr.mxu0 0.0
    %70 = vmatpush1.msra.mxu0 0.0
    %71 = vmatprep.subr.mxu0 0.0
    %72 = vmatpush1.msra.mxu0 0.0
    %73 = vmatprep.subr.mxu0 0.0
    %74 = vmatpush1.msra.mxu0 0.0
    %75 = vmatprep.subr.mxu0 0.0
    %76 = vmatpush1.msra.mxu0 0.0
    %77 = vmatprep.subr.mxu0 0.0
    %78 = vmatpush1.msra.mxu0 0.0
    %79 = vmatprep.subr.mxu0 0.0
    %80 = vmatpush1.msra.mxu0 0.0
    %81 = vmatprep.subr.mxu0 0.0
    %82 = vmatpush1.msra.mxu0 0.0
    %83 = vmatprep.subr.mxu0 0.0
    %84 = vmatpush1.msra.mxu0 0.0
    %85 = vmatprep.subr.mxu0 0.0
    %86 = vmatpush1.msra.mxu0 0.0
    %87 = vmatprep.subr.mxu0 0.0
    %88 = vmatpush1.msra.mxu0 0.0
    %89 = vmatprep.subr.mxu0 0.0
    %90 = vmatpush1.msra.mxu0 0.0
    %91 = vmatprep.subr.mxu0 0.0
    %92 = vmatpush1.msra.mxu0 0.0
    %93 = vmatprep.subr.mxu0 0.0
    %94 = vmatpush1.msra.mxu0 0.0
    %95 = vmatprep.subr.mxu0 0.0
    %96 = vmatpush1.msra.mxu0 0.0
    %97 = vmatprep.subr.mxu0 0.0
    %98 = vmatpush1.msra.mxu0 0.0
    %99 = vmatprep.subr.mxu0 0.0
    %100 = vmatpush1.msra.mxu0 0.0
    %101 = vmatprep.mubr.f32.mxu0 0.0
    %102 = vmatmul.mubr.f32.gmra.mrb[0].mxu0 %v32
    %v103 = vpop.f32.mrb[0].mxu0
    %v104 = vadd.f32 0.0, %v103
    %v105 = vpop.f32.mrb[0].mxu0
    %106 = vmatprep.mubr.f32.mxu0 0.0
    %107 = vmatmul.mubr.f32.gmra.mrb[0].mxu0 %v35
    %v108 = vpop.f32.mrb[0].mxu0
    %v109 = vadd.f32 0.0, %v108
    %v110 = vpop.f32.mrb[0].mxu0
    %111 = vdwg.mxu0
    %v112 = vadd.f32 %v28, %v104
    %v113 = vadd.f32 %v29, %v109
    %vm114 = vcmask 64512
    %115 = vst.msk [vmem:[#allocation2] sm:$0xff] %vm114, %v112
    %116 = vst.msk [vmem:[#allocation2 + $0x8] sm:$0xff] %vm114, %v113
    // Predicated region
    $region18: #{tpu_custom_call.1} parent=1 // pred_check
      %p117 = pneg %p15
    $region19: #{tpu_custom_call.1} parent=1 // pred_check_branch
      %119 = sbr.rel (%p117) target = $region21
    $region20: #{tpu_custom_call.1} parent=1 // pred_region
      %v120 = vld [vmem:[#allocation2] sm:$0xff]
      %v121 = vld [vmem:[#allocation2 + $0x8] sm:$0xff]
      %v122 = vld [vmem:[%s2] sm:$0xff]
      %v124 = vsel %vm114, %v120, 0
      %v127 = vsel %vm114, %v121, 0
      %129 = vmatprep.subr.mxu0 0.0
      %130 = vmatpush1.msra.mxu0 %v122
      %131 = vmatprep.subr.mxu0 0.0
      %132 = vmatpush1.msra.mxu0 0.0
      %133 = vmatprep.subr.mxu0 0.0
      %134 = vmatpush1.msra.mxu0 0.0
      %135 = vmatprep.subr.mxu0 0.0
      %136 = vmatpush1.msra.mxu0 0.0
      %137 = vmatprep.subr.mxu0 0.0
      %138 = vmatpush1.msra.mxu0 0.0
      %139 = vmatprep.subr.mxu0 0.0
      %140 = vmatpush1.msra.mxu0 0.0
      %141 = vmatprep.subr.mxu0 0.0
      %142 = vmatpush1.msra.mxu0 0.0
      %143 = vmatprep.subr.mxu0 0.0
      %144 = vmatpush1.msra.mxu0 0.0
      %145 = vmatprep.subr.mxu0 0.0
      %146 = vmatpush1.msra.mxu0 0.0
      %147 = vmatprep.subr.mxu0 0.0
      %148 = vmatpush1.msra.mxu0 0.0
      %149 = vmatprep.subr.mxu0 0.0
      %150 = vmatpush1.msra.mxu0 0.0
      %151 = vmatprep.subr.mxu0 0.0
      %152 = vmatpush1.msra.mxu0 0.0
      %153 = vmatprep.subr.mxu0 0.0
      %154 = vmatpush1.msra.mxu0 0.0
      %155 = vmatprep.subr.mxu0 0.0
      %156 = vmatpush1.msra.mxu0 0.0
      %157 = vmatprep.subr.mxu0 0.0
      %158 = vmatpush1.msra.mxu0 0.0
      %159 = vmatprep.subr.mxu0 0.0
      %160 = vmatpush1.msra.mxu0 0.0
      %161 = vmatprep.subr.mxu0 0.0
      %162 = vmatpush1.msra.mxu0 0.0
      %163 = vmatprep.subr.mxu0 0.0
      %164 = vmatpush1.msra.mxu0 0.0
      %165 = vmatprep.subr.mxu0 0.0
      %166 = vmatpush1.msra.mxu0 0.0
      %167 = vmatprep.subr.mxu0 0.0
      %168 = vmatpush1.msra.mxu0 0.0
      %169 = vmatprep.subr.mxu0 0.0
      %170 = vmatpush1.msra.mxu0 0.0
      %171 = vmatprep.subr.mxu0 0.0
      %172 = vmatpush1.msra.mxu0 0.0
      %173 = vmatprep.subr.mxu0 0.0
      %174 = vmatpush1.msra.mxu0 0.0
      %175 = vmatprep.subr.mxu0 0.0
      %176 = vmatpush1.msra.mxu0 0.0
      %177 = vmatprep.subr.mxu0 0.0
      %178 = vmatpush1.msra.mxu0 0.0
      %179 = vmatprep.subr.mxu0 0.0
      %180 = vmatpush1.msra.mxu0 0.0
      %181 = vmatprep.subr.mxu0 0.0
      %182 = vmatpush1.msra.mxu0 0.0
      %183 = vmatprep.subr.mxu0 0.0
      %184 = vmatpush1.msra.mxu0 0.0
      %185 = vmatprep.subr.mxu0 0.0
      %186 = vmatpush1.msra.mxu0 0.0
      %187 = vmatprep.subr.mxu0 0.0
      %188 = vmatpush1.msra.mxu0 0.0
      %189 = vmatprep.subr.mxu0 0.0
      %190 = vmatpush1.msra.mxu0 0.0
      %191 = vmatprep.subr.mxu0 0.0
      %192 = vmatpush1.msra.mxu0 0.0
      %193 = vmatprep.mubr.f32.mxu0 0.0
      %194 = vmatmul.mubr.f32.gmra.mrb[0].mxu0 %v124
      %v195 = vpop.f32.mrb[0].mxu0
      %v196 = vadd.f32 0.0, %v195
      %v197 = vpop.f32.mrb[0].mxu0
      %198 = vmatprep.mubr.f32.mxu0 0.0
      %199 = vmatmul.mubr.f32.gmra.mrb[0].mxu0 %v127
      %v200 = vpop.f32.mrb[0].mxu0
      %v201 = vadd.f32 0.0, %v200
      %v202 = vpop.f32.mrb[0].mxu0
      %203 = vdwg.mxu0
      %204 = vst.msk [vmem:[#allocation3] sm:$0xff] %vm30, %v196
      %205 = vst.msk [vmem:[#allocation3 + $0x8] sm:$0xff] %vm30, %v201
    $region21: #{tpu_custom_call.1} parent=1 // pred_fallthru
      _
    // Predicated region
    $region22: #{tpu_custom_call.1} parent=1 // pred_check
      _
    $region23: #{tpu_custom_call.1} parent=1 // pred_check_branch
      %207 = sbr.rel (0) target = $region25
    $region24: #{tpu_custom_call.1} parent=1 // pred_region
      %s209 = ssub.s32 256, 256
      %210 = vsyncadd [#allocation4], %s209
      %s211 = sshll.u32 [#allocation3], 4
      %s212 = int_to_ptr.vmem [resolvable:$true] %s211
      %217 = dma.vmem_to_hbm [thread:$0]  %s212, 256, %s3, [#allocation4], 128, 128, 8
    $region25: #{tpu_custom_call.1} parent=1 // pred_fallthru
      _
    // Predicated region
    $region26: #{tpu_custom_call.1} parent=1 // pred_check
      _
    $region27: #{tpu_custom_call.1} parent=1 // pred_check_branch
      %219 = sbr.rel (0) target = $region29
    $region28: #{tpu_custom_call.1} parent=1 // pred_region
      %220 = dma.done [#allocation4], 256
    $region29: #{tpu_custom_call.1} parent=1 // pred_fallthru
      _
    %221 = vsyncpa [#allocation4], 1

</llo_original>
